<compile_context>
chip_gen: v6e
topology: v6e:2x2x1
jax: 0.10.0
libtpu: 0.0.40
codegen_flags: <defaults>
</compile_context>

<pallas_src>
import functools

import jax
import jax.numpy as jnp
from jax.experimental import pallas as pl
from jax.experimental.pallas import tpu as pltpu


def _round_up(x, m):
    return (x + m - 1) // m * m


def _vmem_capacity_bytes():
    try:
        return int(pltpu.get_tpu_info().vmem_capacity_bytes)
    except Exception:
        return 64 * 1024 * 1024  # conservative: v7x per-TensorCore VMEM


def _num_tensorcores():
    probes = (
        lambda: getattr(pltpu.get_tpu_info(), "num_cores"),
        lambda: getattr(jax.devices()[0], "num_cores"),
    )
    for probe in probes:
        try:
            v = int(probe())
            if v > 0:
                return v
        except Exception:
            pass
    return 2  # assume 2 TCs (v7x); harmless slight tm cap on single-TC chips


def _pick_tiles(n, d_pad, in_item_bytes, budget, num_cores):
    """Pick (tm, tn, n_pad): 16-aligned power-of-two tiles.  Bias toward large
    row tiles (the whole column stream is re-read once per row tile), cap the
    reduction tile at 512, keep grid[0] shardable across TensorCores, and stay
    inside the VMEM budget.  n is padded UP to a multiple of the chosen tiles
    instead of forcing the tiles to divide it."""
    n_base = _round_up(max(n, 16), 16)

    def vmem_est(tm, tn):
        return (2 * (tm + tn) * d_pad * in_item_bytes   # double-buffered input blocks
                + 5 * tm * tn * 4                        # f32 similarity-tile temporaries
                + 8 * tm * 4                             # (tm, 1) scratch + out block
                + (1 << 20))                             # compiler scratch slack

    sizes = [16 << k for k in range(8)]                  # 16 .. 2048
    best = None
    for tn in sizes:
        if tn > 512:                                     # cap the reduction tile
            break
        for tm in sizes:
            if vmem_est(tm, tn) > budget:
                continue
            n_pad = _round_up(n_base, max(tm, tn))       # pow2 tiles -> both divide
            gm, gn = n_pad // tm, n_pad // tn
            # HBM-traffic proxy (col stream re-read per row tile + row stream)
            # plus a per-grid-step overhead term (~0.35 us expressed in bytes).
            score = (gm + 1) * n_pad * d_pad * in_item_bytes + gm * gn * 300_000
            if gm < num_cores:                           # keep megacore busy (v7x)
                score *= 2
            cand = (score, gm * gn, -tm, tm, tn, n_pad)
            if best is None or cand < best:
                best = cand
    if best is None:
        return 16, 16, _round_up(n_base, 16)
    return best[3], best[4], best[5]


def _loss_kernel(zr_ref, zc_ref, out_ref, m_ref, l_ref, p_ref, *,
                 inv_temp, n_valid, tm, tn):
    i = pl.program_id(0)      # row-tile index ("parallel")
    j = pl.program_id(1)      # column-tile index ("arbitrary" reduction)
    r0 = i * tm
    c0 = j * tn

    @pl.when(j == 0)
    def _init():
        m_ref[...] = jnp.full(m_ref.shape, -1e30, jnp.float32)
        l_ref[...] = jnp.zeros(l_ref.shape, jnp.float32)
        p_ref[...] = jnp.zeros(p_ref.shape, jnp.float32)

    # (tm, tn) scaled similarity tile on the MXU.  Operands are streamed
    # pre-normalized (bf16 by default), accumulation is f32, and contracting
    # the last dims of both operands avoids materializing any transpose.
    s = jax.lax.dot_general(
        zr_ref[...], zc_ref[...],
        dimension_numbers=(((1,), (1,)), ((), ())),
        preferred_element_type=jnp.float32) * jnp.float32(inv_temp)

    def lse_update(vals):
        # Online (flash-style) log-sum-exp update, all in f32.
        m_prev = m_ref[...]
        m_new = jnp.maximum(m_prev, jnp.max(vals, axis=1, keepdims=True))
        l_ref[...] = (l_ref[...] * jnp.exp(m_prev - m_new)
                      + jnp.sum(jnp.exp(vals - m_new), axis=1, keepdims=True))
        m_ref[...] = m_new

    # Only tiles that can touch the diagonal or the zero-padded columns pay for
    # the iota/compare/select mask; every other tile takes the mask-free path.
    diag_hits = jnp.logical_and(r0 < c0 + tn, c0 < r0 + tm)
    pad_hits = (c0 + tn) > n_valid
    needs_mask = jnp.logical_or(diag_hits, pad_hits)

    @pl.when(needs_mask)
    def _masked():
        row_g = r0 + jax.lax.broadcasted_iota(jnp.int32, (tm, tn), 0)
        col_g = c0 + jax.lax.broadcasted_iota(jnp.int32, (tm, tn), 1)
        invalid = jnp.logical_or(col_g == row_g, col_g >= n_valid)
        lse_update(jnp.where(invalid, jnp.float32(-1e30), s))

    @pl.when(jnp.logical_not(needs_mask))
    def _fast():
        lse_update(s)

    # Positive pair for row r is column r + 1; only the column tiles whose
    # range intersects [r0 + 1, r0 + tm] run the pickup.
    @pl.when(jnp.logical_and(c0 < r0 + tm + 1, r0 + 1 < c0 + tn))
    def _pos():
        row_g = r0 + jax.lax.broadcasted_iota(jnp.int32, (tm, tn), 0)
        col_g = c0 + jax.lax.broadcasted_iota(jnp.int32, (tm, tn), 1)
        p_ref[...] += jnp.sum(
            jnp.where(col_g == row_g + 1, s, jnp.float32(0.0)),
            axis=1, keepdims=True)

    @pl.when(j == pl.num_programs(1) - 1)
    def _finalize():
        # -log_softmax at the positive position, per row: lse - pos.
        out_ref[...] = m_ref[...] + jnp.log(l_ref[...]) - p_ref[...]


def contrastive_loss(z1, z2, temperature, *, compute_dtype=jnp.bfloat16):
    assert z1.shape == z2.shape and z1.ndim == 2
    bsz, d = z1.shape
    n = 2 * bsz                                 # rows of the concatenated batch
    d_pad = _round_up(d, 128)                   # lane-aligned feature dim
    in_item_bytes = jnp.dtype(compute_dtype).itemsize

    vmem_cap = _vmem_capacity_bytes()
    vmem_limit = int(min(vmem_cap * 3 // 4, 96 * 1024 * 1024))  # ~48 MiB on v7x
    budget = vmem_limit * 4 // 5
    num_cores = _num_tensorcores()

    tm, tn, n_pad = _pick_tiles(n, d_pad, in_item_bytes, budget, num_cores)
    grid = (n_pad // tm, n_pad // tn)

    # One O(n*D) normalization pass in the wrapper; the module's second
    # normalize of the concatenation is an identity on unit-norm rows and is
    # dropped.  Zero-padded rows/cols stay zero and are masked / sliced off.
    def _norm(x):
        x = x.astype(jnp.float32)
        return x / jnp.maximum(jnp.linalg.norm(x, axis=1, keepdims=True), 1e-12)

    z = jnp.concatenate([_norm(z1), _norm(z2)], axis=0)
    z = jnp.pad(z, ((0, n_pad - n), (0, d_pad - d))).astype(compute_dtype)

    # NOTE: n_valid/tm/tn are baked in as Python ints -> recompile per shape.
    kernel = functools.partial(
        _loss_kernel,
        inv_temp=1.0 / float(temperature),
        n_valid=int(n), tm=int(tm), tn=int(tn))

    cost = pl.CostEstimate(
        flops=2 * n_pad * n_pad * d_pad + 12 * n_pad * n_pad,
        transcendentals=n_pad * n_pad + 4 * n_pad,
        bytes_accessed=in_item_bytes * n_pad * d_pad * (grid[0] + 1) + 4 * n_pad)

    per_row = pl.pallas_call(
        kernel,
        out_shape=jax.ShapeDtypeStruct((n_pad, 1), jnp.float32),
        grid_spec=pltpu.PrefetchScalarGridSpec(
            num_scalar_prefetch=0,
            grid=grid,
            in_specs=[
                pl.BlockSpec((tm, d_pad), lambda i, j: (i, 0)),   # row tile
                pl.BlockSpec((tn, d_pad), lambda i, j: (j, 0)),   # column tile
            ],
            out_specs=pl.BlockSpec((tm, 1), lambda i, j: (i, 0)),
            scratch_shapes=[
                pltpu.VMEM((tm, 1), jnp.float32),   # running max
                pltpu.VMEM((tm, 1), jnp.float32),   # running sum-exp
                pltpu.VMEM((tm, 1), jnp.float32),   # positive-pair accumulator
            ]),
        compiler_params=pltpu.CompilerParams(
            dimension_semantics=("parallel", "arbitrary"),
            vmem_limit_bytes=vmem_limit),
        cost_estimate=cost,
    )(z, z)

    # diag of the (n, n-1) reduced matrix has n-1 entries -> rows 0 .. n-2.
    return jnp.sum(per_row[: n - 1, 0]) / jnp.float32(n - 1)


def _reference(z1, z2, temperature):
    # Pure-JAX transcription of the PyTorch module (eager, small shapes).
    def norm(x):
        return x / jnp.maximum(jnp.linalg.norm(x, axis=1, keepdims=True), 1e-12)

    e = norm(jnp.concatenate([norm(z1), norm(z2)], axis=0))
    n = e.shape[0]
    sim = e @ e.T
    mask = ~jnp.eye(n, dtype=bool)
    sim_r = sim[mask].reshape(n, n - 1)
    ls = -jax.nn.log_softmax(sim_r / temperature, axis=1)
    return jnp.mean(jnp.diagonal(ls))


if __name__ == "__main__":
    key = jax.random.PRNGKey(0)
    k1, k2 = jax.random.split(key)
    B, D = 8, 32
    temperature = 0.5

    z1 = jax.random.normal(k1, (B, D), dtype=jnp.float32)
    z2 = jax.random.normal(k2, (B, D), dtype=jnp.float32)

    ref = _reference(z1, z2, temperature)

    # f32 streaming path: tight check against the pure-JAX reference.
    loss_f32 = contrastive_loss(z1, z2, temperature, compute_dtype=jnp.float32)
    jax.block_until_ready(loss_f32)
    assert jnp.allclose(loss_f32, ref, atol=1e-5, rtol=1e-5), (loss_f32, ref)

    # bf16 streaming path (default; MXU-native on v5e/v6e/v7x): looser check.
    loss_bf16 = contrastive_loss(z1, z2, temperature)
    jax.block_until_ready(loss_bf16)
    assert jnp.allclose(loss_bf16, ref, atol=5e-2, rtol=5e-2), (loss_bf16, ref)

    print("KERNEL_OK")
</pallas_src>

<mosaic_0001>
module attributes {stable_mosaic.version = 11 : i64} {
  func.func @_loss_kernel(%arg0: i32, %arg1: i32, %arg2: memref<16x128xf32, #tpu.memory_space<vmem>>, %arg3: memref<16x128xf32, #tpu.memory_space<vmem>>, %arg4: memref<16x1xf32, #tpu.memory_space<vmem>>, %arg5: memref<16x1xf32, #tpu.memory_space<vmem>>, %arg6: memref<16x1xf32, #tpu.memory_space<vmem>>, %arg7: memref<16x1xf32, #tpu.memory_space<vmem>>) attributes {dimension_semantics = [#tpu.dimension_semantics<parallel>, #tpu.dimension_semantics<arbitrary>], iteration_bounds = array<i64: 1, 1>, scalar_prefetch = 0 : i64, scratch_operands = 3 : i64, tpu.core_type = #tpu.core_type<tc>, window_params = [{transform_indices = @transform_0, window_bounds = array<i64: 16, 128>}, {transform_indices = @transform_1, window_bounds = array<i64: 16, 128>}, {transform_indices = @transform_2, window_bounds = array<i64: 16, 1>}]} {
    %c16_i32 = arith.constant 16 : i32
    %0 = arith.muli %arg0, %c16_i32 : i32
    %c16_i32_0 = arith.constant 16 : i32
    %1 = arith.muli %arg1, %c16_i32_0 : i32
    %c0_i32 = arith.constant 0 : i32
    %2 = arith.cmpi eq, %arg1, %c0_i32 : i32
    %3 = arith.extui %2 : i1 to i32
    %c0_i32_1 = arith.constant 0 : i32
    %4 = arith.cmpi ne, %3, %c0_i32_1 : i32
    scf.if %4 {
      %cst_18 = arith.constant -1.000000e+30 : f32
      %35 = vector.broadcast %cst_18 : f32 to vector<16x1xf32>
      %c0_19 = arith.constant 0 : index
      %c0_20 = arith.constant 0 : index
      %36 = vector.load %arg5[%c0_19, %c0_20] : memref<16x1xf32, #tpu.memory_space<vmem>>, vector<16x1xf32>
      tpu.vector_store %arg5[%c0_19, %c0_20], %35 {strides = array<i32>} : memref<16x1xf32, #tpu.memory_space<vmem>>, vector<16x1xf32>,
      %cst_21 = arith.constant 0.000000e+00 : f32
      %37 = vector.broadcast %cst_21 : f32 to vector<16x1xf32>
      %c0_22 = arith.constant 0 : index
      %c0_23 = arith.constant 0 : index
      %38 = vector.load %arg6[%c0_22, %c0_23] : memref<16x1xf32, #tpu.memory_space<vmem>>, vector<16x1xf32>
      tpu.vector_store %arg6[%c0_22, %c0_23], %37 {strides = array<i32>} : memref<16x1xf32, #tpu.memory_space<vmem>>, vector<16x1xf32>,
      %cst_24 = arith.constant 0.000000e+00 : f32
      %39 = vector.broadcast %cst_24 : f32 to vector<16x1xf32>
      %c0_25 = arith.constant 0 : index
      %c0_26 = arith.constant 0 : index
      %40 = vector.load %arg7[%c0_25, %c0_26] : memref<16x1xf32, #tpu.memory_space<vmem>>, vector<16x1xf32>
      tpu.vector_store %arg7[%c0_25, %c0_26], %39 {strides = array<i32>} : memref<16x1xf32, #tpu.memory_space<vmem>>, vector<16x1xf32>,
    } else {
    }
    %c0 = arith.constant 0 : index
    %c0_2 = arith.constant 0 : index
    %5 = vector.load %arg2[%c0, %c0_2] : memref<16x128xf32, #tpu.memory_space<vmem>>, vector<16x128xf32>
    %c0_3 = arith.constant 0 : index
    %c0_4 = arith.constant 0 : index
    %6 = vector.load %arg3[%c0_3, %c0_4] : memref<16x128xf32, #tpu.memory_space<vmem>>, vector<16x128xf32>
    %cst = arith.constant dense<0.000000e+00> : vector<16x16xf32>
    %7 = tpu.matmul %5, %6, %cst {dimension_numbers = #tpu.dot_dimension_numbers<[1], [1], [0], [0], [0, 0, 1, 0], [], []>} : vector<16x128xf32>, vector<16x128xf32>, vector<16x16xf32> -> vector<16x16xf32>
    %cst_5 = arith.constant 2.000000e+00 : f32
    %8 = vector.broadcast %cst_5 : f32 to vector<16x16xf32>
    %9 = arith.mulf %7, %8 : vector<16x16xf32>
    %c16_i32_6 = arith.constant 16 : i32
    %10 = arith.addi %1, %c16_i32_6 : i32
    %11 = arith.cmpi slt, %0, %10 : i32
    %c16_i32_7 = arith.constant 16 : i32
    %12 = arith.addi %0, %c16_i32_7 : i32
    %13 = arith.cmpi slt, %1, %12 : i32
    %14 = arith.andi %11, %13 : i1
    %c16_i32_8 = arith.constant 16 : i32
    %15 = arith.addi %1, %c16_i32_8 : i32
    %c16_i32_9 = arith.constant 16 : i32
    %16 = arith.cmpi sgt, %15, %c16_i32_9 : i32
    %17 = arith.ori %14, %16 : i1
    %18 = arith.extui %17 : i1 to i32
    %c0_i32_10 = arith.constant 0 : i32
    %19 = arith.cmpi ne, %18, %c0_i32_10 : i32
    scf.if %19 {
      %35 = tpu.iota {dimensions = array<i32: 0>} : vector<16x16xi32>
      %36 = vector.broadcast %0 : i32 to vector<16x16xi32>
      %37 = arith.addi %36, %35 : vector<16x16xi32>
      %38 = tpu.iota {dimensions = array<i32: 1>} : vector<16x16xi32>
      %39 = vector.broadcast %1 : i32 to vector<16x16xi32>
      %40 = arith.addi %39, %38 : vector<16x16xi32>
      %41 = arith.cmpi eq, %40, %37 : vector<16x16xi32>
      %c16_i32_18 = arith.constant 16 : i32
      %42 = vector.broadcast %c16_i32_18 : i32 to vector<16x16xi32>
      %43 = arith.cmpi sge, %40, %42 : vector<16x16xi32>
      %44 = arith.ori %41, %43 : vector<16x16xi1>
      %cst_19 = arith.constant -1.000000e+30 : f32
      %45 = vector.broadcast %cst_19 : f32 to vector<16x16xf32>
      %46 = arith.select %44, %45, %9 : vector<16x16xi1>, vector<16x16xf32>
      %c0_20 = arith.constant 0 : index
      %c0_21 = arith.constant 0 : index
      %47 = vector.load %arg5[%c0_20, %c0_21] : memref<16x1xf32, #tpu.memory_space<vmem>>, vector<16x1xf32>
      %cst_22 = arith.constant dense<0xFF800000> : vector<16xf32>
      %48 = vector.multi_reduction <maximumf>, %46, %cst_22 [1] : vector<16x16xf32> to vector<16xf32>
      %49 = vector.shape_cast %48 : vector<16xf32> to vector<16x1xf32>
      %50 = arith.maximumf %47, %49 : vector<16x1xf32>
      %c0_23 = arith.constant 0 : index
      %c0_24 = arith.constant 0 : index
      %51 = vector.load %arg6[%c0_23, %c0_24] : memref<16x1xf32, #tpu.memory_space<vmem>>, vector<16x1xf32>
      %52 = arith.subf %47, %50 : vector<16x1xf32>
      %53 = math.exp %52 : vector<16x1xf32>
      %54 = arith.mulf %51, %53 : vector<16x1xf32>
      %55 = vector.broadcast %50 : vector<16x1xf32> to vector<16x16xf32>
      %56 = arith.subf %46, %55 : vector<16x16xf32>
      %57 = math.exp %56 : vector<16x16xf32>
      %cst_25 = arith.constant dense<0.000000e+00> : vector<16xf32>
      %58 = vector.multi_reduction <add>, %57, %cst_25 [1] : vector<16x16xf32> to vector<16xf32>
      %59 = vector.shape_cast %58 : vector<16xf32> to vector<16x1xf32>
      %60 = arith.addf %54, %59 : vector<16x1xf32>
      %c0_26 = arith.constant 0 : index
      %c0_27 = arith.constant 0 : index
      %61 = vector.load %arg6[%c0_26, %c0_27] : memref<16x1xf32, #tpu.memory_space<vmem>>, vector<16x1xf32>
      tpu.vector_store %arg6[%c0_26, %c0_27], %60 {strides = array<i32>} : memref<16x1xf32, #tpu.memory_space<vmem>>, vector<16x1xf32>,
      %c0_28 = arith.constant 0 : index
      %c0_29 = arith.constant 0 : index
      %62 = vector.load %arg5[%c0_28, %c0_29] : memref<16x1xf32, #tpu.memory_space<vmem>>, vector<16x1xf32>
      tpu.vector_store %arg5[%c0_28, %c0_29], %50 {strides = array<i32>} : memref<16x1xf32, #tpu.memory_space<vmem>>, vector<16x1xf32>,
    } else {
    }
    %true = arith.constant true
    %20 = arith.xori %17, %true : i1
    %21 = arith.extui %20 : i1 to i32
    %c0_i32_11 = arith.constant 0 : i32
    %22 = arith.cmpi ne, %21, %c0_i32_11 : i32
    scf.if %22 {
      %c0_18 = arith.constant 0 : index
      %c0_19 = arith.constant 0 : index
      %35 = vector.load %arg5[%c0_18, %c0_19] : memref<16x1xf32, #tpu.memory_space<vmem>>, vector<16x1xf32>
      %cst_20 = arith.constant dense<0xFF800000> : vector<16xf32>
      %36 = vector.multi_reduction <maximumf>, %9, %cst_20 [1] : vector<16x16xf32> to vector<16xf32>
      %37 = vector.shape_cast %36 : vector<16xf32> to vector<16x1xf32>
      %38 = arith.maximumf %35, %37 : vector<16x1xf32>
      %c0_21 = arith.constant 0 : index
      %c0_22 = arith.constant 0 : index
      %39 = vector.load %arg6[%c0_21, %c0_22] : memref<16x1xf32, #tpu.memory_space<vmem>>, vector<16x1xf32>
      %40 = arith.subf %35, %38 : vector<16x1xf32>
      %41 = math.exp %40 : vector<16x1xf32>
      %42 = arith.mulf %39, %41 : vector<16x1xf32>
      %43 = vector.broadcast %38 : vector<16x1xf32> to vector<16x16xf32>
      %44 = arith.subf %9, %43 : vector<16x16xf32>
      %45 = math.exp %44 : vector<16x16xf32>
      %cst_23 = arith.constant dense<0.000000e+00> : vector<16xf32>
      %46 = vector.multi_reduction <add>, %45, %cst_23 [1] : vector<16x16xf32> to vector<16xf32>
      %47 = vector.shape_cast %46 : vector<16xf32> to vector<16x1xf32>
      %48 = arith.addf %42, %47 : vector<16x1xf32>
      %c0_24 = arith.constant 0 : index
      %c0_25 = arith.constant 0 : index
      %49 = vector.load %arg6[%c0_24, %c0_25] : memref<16x1xf32, #tpu.memory_space<vmem>>, vector<16x1xf32>
      tpu.vector_store %arg6[%c0_24, %c0_25], %48 {strides = array<i32>} : memref<16x1xf32, #tpu.memory_space<vmem>>, vector<16x1xf32>,
      %c0_26 = arith.constant 0 : index
      %c0_27 = arith.constant 0 : index
      %50 = vector.load %arg5[%c0_26, %c0_27] : memref<16x1xf32, #tpu.memory_space<vmem>>, vector<16x1xf32>
      tpu.vector_store %arg5[%c0_26, %c0_27], %38 {strides = array<i32>} : memref<16x1xf32, #tpu.memory_space<vmem>>, vector<16x1xf32>,
    } else {
    }
    %c16_i32_12 = arith.constant 16 : i32
    %23 = arith.addi %0, %c16_i32_12 : i32
    %c1_i32 = arith.constant 1 : i32
    %24 = arith.addi %23, %c1_i32 : i32
    %25 = arith.cmpi slt, %1, %24 : i32
    %c1_i32_13 = arith.constant 1 : i32
    %26 = arith.addi %0, %c1_i32_13 : i32
    %c16_i32_14 = arith.constant 16 : i32
    %27 = arith.addi %1, %c16_i32_14 : i32
    %28 = arith.cmpi slt, %26, %27 : i32
    %29 = arith.andi %25, %28 : i1
    %30 = arith.extui %29 : i1 to i32
    %c0_i32_15 = arith.constant 0 : i32
    %31 = arith.cmpi ne, %30, %c0_i32_15 : i32
    scf.if %31 {
      %35 = tpu.iota {dimensions = array<i32: 0>} : vector<16x16xi32>
      %36 = vector.broadcast %0 : i32 to vector<16x16xi32>
      %37 = arith.addi %36, %35 : vector<16x16xi32>
      %38 = tpu.iota {dimensions = array<i32: 1>} : vector<16x16xi32>
      %39 = vector.broadcast %1 : i32 to vector<16x16xi32>
      %40 = arith.addi %39, %38 : vector<16x16xi32>
      %c0_18 = arith.constant 0 : index
      %c0_19 = arith.constant 0 : index
      %41 = vector.load %arg7[%c0_18, %c0_19] : memref<16x1xf32, #tpu.memory_space<vmem>>, vector<16x1xf32>
      %c1_i32_20 = arith.constant 1 : i32
      %42 = vector.broadcast %c1_i32_20 : i32 to vector<16x16xi32>
      %43 = arith.addi %37, %42 : vector<16x16xi32>
      %44 = arith.cmpi eq, %40, %43 : vector<16x16xi32>
      %cst_21 = arith.constant 0.000000e+00 : f32
      %45 = vector.broadcast %cst_21 : f32 to vector<16x16xf32>
      %46 = arith.select %44, %9, %45 : vector<16x16xi1>, vector<16x16xf32>
      %cst_22 = arith.constant dense<0.000000e+00> : vector<16xf32>
      %47 = vector.multi_reduction <add>, %46, %cst_22 [1] : vector<16x16xf32> to vector<16xf32>
      %48 = vector.shape_cast %47 : vector<16xf32> to vector<16x1xf32>
      %49 = arith.addf %41, %48 : vector<16x1xf32>
      %c0_23 = arith.constant 0 : index
      %c0_24 = arith.constant 0 : index
      %50 = vector.load %arg7[%c0_23, %c0_24] : memref<16x1xf32, #tpu.memory_space<vmem>>, vector<16x1xf32>
      tpu.vector_store %arg7[%c0_23, %c0_24], %49 {strides = array<i32>} : memref<16x1xf32, #tpu.memory_space<vmem>>, vector<16x1xf32>,
    } else {
    }
    %c0_i32_16 = arith.constant 0 : i32
    %32 = arith.cmpi eq, %arg1, %c0_i32_16 : i32
    %33 = arith.extui %32 : i1 to i32
    %c0_i32_17 = arith.constant 0 : i32
    %34 = arith.cmpi ne, %33, %c0_i32_17 : i32
    scf.if %34 {
      %c0_18 = arith.constant 0 : index
      %c0_19 = arith.constant 0 : index
      %35 = vector.load %arg5[%c0_18, %c0_19] : memref<16x1xf32, #tpu.memory_space<vmem>>, vector<16x1xf32>
      %c0_20 = arith.constant 0 : index
      %c0_21 = arith.constant 0 : index
      %36 = vector.load %arg6[%c0_20, %c0_21] : memref<16x1xf32, #tpu.memory_space<vmem>>, vector<16x1xf32>
      %37 = math.log %36 : vector<16x1xf32>
      %38 = arith.addf %35, %37 : vector<16x1xf32>
      %c0_22 = arith.constant 0 : index
      %c0_23 = arith.constant 0 : index
      %39 = vector.load %arg7[%c0_22, %c0_23] : memref<16x1xf32, #tpu.memory_space<vmem>>, vector<16x1xf32>
      %40 = arith.subf %38, %39 : vector<16x1xf32>
      %c0_24 = arith.constant 0 : index
      %c0_25 = arith.constant 0 : index
      %41 = vector.load %arg4[%c0_24, %c0_25] : memref<16x1xf32, #tpu.memory_space<vmem>>, vector<16x1xf32>
      tpu.vector_store %arg4[%c0_24, %c0_25], %40 {strides = array<i32>} : memref<16x1xf32, #tpu.memory_space<vmem>>, vector<16x1xf32>,
    } else {
    }
    return
  }
  func.func @transform_0(%arg0: i32, %arg1: i32) -> (i32, i32) {
    %c0_i32 = arith.constant 0 : i32
    %c0_i32_0 = arith.constant 0 : i32
    return %arg0, %c0_i32 : i32, i32
  }
  func.func @transform_1(%arg0: i32, %arg1: i32) -> (i32, i32) {
    %c0_i32 = arith.constant 0 : i32
    %c0_i32_0 = arith.constant 0 : i32
    return %arg1, %c0_i32 : i32, i32
  }
  func.func @transform_2(%arg0: i32, %arg1: i32) -> (i32, i32) {
    %c0_i32 = arith.constant 0 : i32
    %c0_i32_0 = arith.constant 0 : i32
    return %arg0, %c0_i32 : i32, i32
  }
}

</mosaic_0001>

<llo_original>
// kernel: tpu_custom_call.1
$region0: #{tpu_custom_call.1}
  #allocation0 [shape = 'u32[]', space=smem, size = 0x4, offset = 0x4, fixed_abs, tag = 'smem constant byte address 0x4 - core index']
  #allocation1 [shape = 'u32[144,128]{1,0:T(1,128)}', space=vmem, size = 0x12000, scoped, tag = 'internal scratch']
  #allocation2 [shape = 'f32[16,1]{1,0:T(8,128)}', space=vmem, size = 0x2000, scoped, tag = 'scratch operand']
  #allocation3 [shape = 'f32[16,1]{1,0:T(8,128)}', space=vmem, size = 0x2000, scoped, tag = 'scratch operand']
  #allocation4 [shape = 'f32[16,1]{1,0:T(8,128)}', space=vmem, size = 0x2000, scoped, tag = 'scratch operand']
  %s0 = inlined_call_operand.hbm [shape: f32[16,128], index: 0, kind: input, shape index: {}]
  %s1 = inlined_call_operand.hbm [shape: f32[16,128], index: 1, kind: input, shape index: {}]
  %s2 = inlined_call_operand.vmem [shape: f32[16,1], index: 2, kind: output, shape index: {}]
  %s3 = sld [smem:[#allocation0]]
  $region46: #{tpu_custom_call.1} parent=0
    _
  %s5 = ssub.s32 1, %s3
  %s6 = scalar_select 0, %s5, %s3
  $region1: #{tpu_custom_call.1} parent=0
    #allocation5 [shape = 'u8[8192]{0}', space=vmem, size = 0x2000, scoped, tag = 'input window, operand 0, single buffered']
    #allocation6 [shape = 's32[1]{0}', space=sflag, size = 0x4, scoped, tag = 'scoped memory for tpu_custom_call.1']
    #allocation7 [shape = 'u8[8192]{0}', space=vmem, size = 0x2000, scoped, tag = 'input window, operand 1, single buffered']
    #allocation8 [shape = 's32[1]{0}', space=sflag, size = 0x4, scoped, tag = 'scoped memory for tpu_custom_call.1']
    %7 = vsyncpa [#allocation6], 0
    %8 = vsyncpa [#allocation8], 0
    // Predicated region
    $region2: #{tpu_custom_call.1} parent=1 // pred_check
      _
    $region3: #{tpu_custom_call.1} parent=1 // pred_check_branch
      %10 = sbr.rel (0) target = $region5
    $region4: #{tpu_custom_call.1} parent=1 // pred_region
      %s12 = ssub.s32 256, 256
      %13 = vsyncadd [#allocation6], %s12
      %s14 = sshll.u32 [#allocation5], 4
      %s15 = int_to_ptr.vmem [resolvable:$true] %s14
      %20 = dma.hbm_to_vmem [thread:$0]  %s0, 256, %s15, [#allocation6], 128, 128, 8
    $region5: #{tpu_custom_call.1} parent=1 // pred_fallthru
      _
    // Predicated region
    $region6: #{tpu_custom_call.1} parent=1 // pred_check
      _
    $region7: #{tpu_custom_call.1} parent=1 // pred_check_branch
      %22 = sbr.rel (0) target = $region9
    $region8: #{tpu_custom_call.1} parent=1 // pred_region
      %s24 = ssub.s32 256, 256
      %25 = vsyncadd [#allocation8], %s24
      %s26 = sshll.u32 [#allocation7], 4
      %s27 = int_to_ptr.vmem [resolvable:$true] %s26
      %32 = dma.hbm_to_vmem [thread:$0]  %s1, 256, %s27, [#allocation8], 128, 128, 8
    $region9: #{tpu_custom_call.1} parent=1 // pred_fallthru
      _
    // Predicated region
    $region10: #{tpu_custom_call.1} parent=1 // pred_check
      _
    $region11: #{tpu_custom_call.1} parent=1 // pred_check_branch
      %34 = sbr.rel (0) target = $region13
    $region12: #{tpu_custom_call.1} parent=1 // pred_region
      %35 = dma.done [#allocation6], 256
    $region13: #{tpu_custom_call.1} parent=1 // pred_fallthru
      _
    // Predicated region
    $region14: #{tpu_custom_call.1} parent=1 // pred_check
      _
    $region15: #{tpu_custom_call.1} parent=1 // pred_check_branch
      %37 = sbr.rel (0) target = $region17
    $region16: #{tpu_custom_call.1} parent=1 // pred_region
      %38 = dma.done [#allocation8], 256
    $region17: #{tpu_custom_call.1} parent=1 // pred_fallthru
      _
    %s39 = smul.u32 0, 16
    %s40 = smul.u32 0, 16
    %p41 = scmp.eq.s32.totalorder 0, 0
    // Predicated region
    $region18: #{tpu_custom_call.1} parent=1 // pred_check
      %p42 = pneg %p41
    $region19: #{tpu_custom_call.1} parent=1 // pred_check_branch
      %44 = sbr.rel (%p42) target = $region21
    $region20: #{tpu_custom_call.1} parent=1 // pred_region
      %vm45 = vcmask 7168
      %46 = vst.msk [vmem:[#allocation2] sm:$0xff] %vm45, -1e+30
      %47 = vst.msk [vmem:[#allocation2 + $0x8] sm:$0xff] %vm45, -1e+30
      %48 = vst.msk [vmem:[#allocation3] sm:$0xff] %vm45, 0.0
      %49 = vst.msk [vmem:[#allocation3 + $0x8] sm:$0xff] %vm45, 0.0
      %50 = vst.msk [vmem:[#allocation4] sm:$0xff] %vm45, 0.0
      %51 = vst.msk [vmem:[#allocation4 + $0x8] sm:$0xff] %vm45, 0.0
    $region21: #{tpu_custom_call.1} parent=1 // pred_fallthru
      _
    %v52 = vld [vmem:[#allocation5] sm:$0xff]
    %v53 = vld [vmem:[#allocation5 + $0x8] sm:$0xff]
    %v54 = vld [vmem:[#allocation7] sm:$0xff]
    %v55 = vld [vmem:[#allocation7 + $0x8] sm:$0xff]
    %56 = vmatprep.subr.mxu0 0.0
    %57 = vmatpush1.xpose.msra.mxu0 0.0
    %58 = vmatprep.subr.mxu0 0.0
    %59 = vmatpush1.xpose.msra.mxu0 0.0
    %60 = vmatprep.subr.mxu0 0.0
    %61 = vmatpush1.xpose.msra.mxu0 0.0
    %62 = vmatprep.subr.mxu0 0.0
    %63 = vmatpush1.xpose.msra.mxu0 0.0
    %64 = vmatprep.subr.mxu0 0.0
    %65 = vmatpush1.xpose.msra.mxu0 0.0
    %66 = vmatprep.subr.mxu0 0.0
    %67 = vmatpush1.xpose.msra.mxu0 0.0
    %68 = vmatprep.subr.mxu0 0.0
    %69 = vmatpush1.xpose.msra.mxu0 0.0
    %70 = vmatprep.subr.mxu0 0.0
    %71 = vmatpush1.xpose.msra.mxu0 0.0
    %72 = vmatprep.subr.mxu0 0.0
    %73 = vmatpush1.xpose.msra.mxu0 0.0
    %74 = vmatprep.subr.mxu0 0.0
    %75 = vmatpush1.xpose.msra.mxu0 0.0
    %76 = vmatprep.subr.mxu0 0.0
    %77 = vmatpush1.xpose.msra.mxu0 0.0
    %78 = vmatprep.subr.mxu0 0.0
    %79 = vmatpush1.xpose.msra.mxu0 0.0
    %80 = vmatprep.subr.mxu0 0.0
    %81 = vmatpush1.xpose.msra.mxu0 0.0
    %82 = vmatprep.subr.mxu0 0.0
    %83 = vmatpush1.xpose.msra.mxu0 0.0
    %84 = vmatprep.subr.mxu0 0.0
    %85 = vmatpush1.xpose.msra.mxu0 %v55
    %86 = vmatprep.subr.mxu0 0.0
    %87 = vmatpush1.xpose.msra.mxu0 %v54
    %88 = vmatprep.subr.mxu0 0.0
    %89 = vmatpush2.xpose.msra.mxu0 0.0
    %90 = vmatprep.subr.mxu0 0.0
    %91 = vmatpush2.xpose.msra.mxu0 0.0
    %92 = vmatprep.subr.mxu0 0.0
    %93 = vmatpush2.xpose.msra.mxu0 0.0
    %94 = vmatprep.subr.mxu0 0.0
    %95 = vmatpush2.xpose.msra.mxu0 0.0
    %96 = vmatprep.subr.mxu0 0.0
    %97 = vmatpush2.xpose.msra.mxu0 0.0
    %98 = vmatprep.subr.mxu0 0.0
    %99 = vmatpush2.xpose.msra.mxu0 0.0
    %100 = vmatprep.subr.mxu0 0.0
    %101 = vmatpush2.xpose.msra.mxu0 0.0
    %102 = vmatprep.subr.mxu0 0.0
    %103 = vmatpush2.xpose.msra.mxu0 0.0
    %104 = vmatprep.subr.mxu0 0.0
    %105 = vmatpush2.xpose.msra.mxu0 0.0
    %106 = vmatprep.subr.mxu0 0.0
    %107 = vmatpush2.xpose.msra.mxu0 0.0
    %108 = vmatprep.subr.mxu0 0.0
    %109 = vmatpush2.xpose.msra.mxu0 0.0
    %110 = vmatprep.subr.mxu0 0.0
    %111 = vmatpush2.xpose.msra.mxu0 0.0
    %112 = vmatprep.subr.mxu0 0.0
    %113 = vmatpush2.xpose.msra.mxu0 0.0
    %114 = vmatprep.subr.mxu0 0.0
    %115 = vmatpush2.xpose.msra.mxu0 0.0
    %116 = vmatprep.subr.mxu0 0.0
    %117 = vmatpush2.xpose.msra.mxu0 0.0
    %118 = vmatprep.subr.mxu0 0.0
    %119 = vmatpush2.xpose.msra.mxu0 0.0
    %120 = vmatprep.mubr.f32.mxu0 0.0
    %121 = vmatmul.mubr.f32.gmra.mxu0 %v52
    %v122 = vpop.f32.mrf.mxu0
    %v123 = vadd.f32 0.0, %v122
    %v124 = vpop.f32.mrf.mxu0
    %125 = vmatprep.mubr.f32.mxu0 0.0
    %126 = vmatmul.mubr.f32.gmra.mxu0 %v53
    %v127 = vpop.f32.mrf.mxu0
    %v128 = vadd.f32 0.0, %v127
    %v129 = vpop.f32.mrf.mxu0
    %130 = vdwg.mxu0
    %v131 = vmul.f32 %v123, 2.0
    %v132 = vmul.f32 %v128, 2.0
    %s133 = sadd.s32 %s40, 16
    %p134 = scmp.lt.s32.totalorder %s39, %s133
    %s135 = sadd.s32 %s39, 16
    %p136 = scmp.lt.s32.totalorder %s40, %s135
    %p137 = pnand %p134, %p136
    %p138 = pneg %p137
    %p139 = scmp.gt.s32.totalorder %s133, 16
    %p140 = por %p138, %p139
    // Predicated region
    $region22: #{tpu_custom_call.1} parent=1 // pred_check
      %p141 = pneg %p140
    $region23: #{tpu_custom_call.1} parent=1 // pred_check_branch
      %143 = sbr.rel (%p141) target = $region25
    $region24: #{tpu_custom_call.1} parent=1 // pred_region
      %v144 = vlaneseq
      %v145 = vshrl.u32 %v144, 7
      %v146 = vadd.s32 %v145, 8
      %v147 = vstv %s39
      %v148 = vadd.s32 %v147, %v145
      %v149 = vadd.s32 %v147, %v146
      %v150 = vlaneseq
      %v151 = vand.u32 %v150, 127
      %v152 = vstv %s40
      %v153 = vadd.s32 %v152, %v151
      %vm154 = vcmp.eq.s32.totalorder %v153, %v148
      %vm155 = vcmp.eq.s32.totalorder %v153, %v149
      %vm156 = vcmp.ge.s32.totalorder %v153, 16
      %vm157 = vmor %vm154, %vm156
      %vm158 = vmor %vm155, %vm156
      %v159 = vsel %vm157, -1e+30, %v131
      %v160 = vsel %vm158, -1e+30, %v132
      %v161 = vld [vmem:[#allocation2] sm:$0xff]
      %v162 = vld [vmem:[#allocation2 + $0x8] sm:$0xff]
      %vm163 = vcmask 130048
      %v164 = vsel %vm163, %v159, -inf
      %165 = vmax.xlane.f32.xlu0 %v164
      %v166 = vpop.xlane.xlu0 %165
      %v167 = vsel %vm163, %v160, -inf
      %168 = vmax.xlane.f32.xlu0 %v167
      %v169 = vpop.xlane.xlu0 %168
      %v170 = vmax.f32 %v161, %v166
      %v171 = vmax.f32 %v162, %v169
      %v172 = vld [vmem:[#allocation3] sm:$0xff]
      %v173 = vld [vmem:[#allocation3 + $0x8] sm:$0xff]
      %v174 = vsub.f32 %v161, %v170
      %v175 = vsub.f32 %v162, %v171
      %v176 = vmul.f32 %v174, 1.442695
      %v177 = vpow.pop %v176
      %v178 = vmul.f32 %v175, 1.442695
      %v179 = vpow.pop %v178
      %v180 = vmul.f32 %v172, %v177
      %v181 = vmul.f32 %v173, %v179
      %183 = vset.pattern.permute.xlu0 0
      %184 = vperm.xlu0 %183, %v170
      %v185 = vpop.permute.xlu0 %184
      %188 = vset.pattern.permute.xlu0 0
      %189 = vperm.xlu0 %188, %v171
      %v190 = vpop.permute.xlu0 %189
      %v192 = vsub.f32 %v159, %v185
      %v193 = vsub.f32 %v160, %v190
      %v194 = vmul.f32 %v192, 1.442695
      %v195 = vpow.pop %v194
      %v196 = vmul.f32 %v193, 1.442695
      %v197 = vpow.pop %v196
      %v198 = vsel %vm163, %v195, 0.0
      %199 = vadd.xlane.f32.xlu0 %v198
      %v200 = vpop.xlane.xlu0 %199
      %v201 = vsel %vm163, %v197, 0.0
      %202 = vadd.xlane.f32.xlu0 %v201
      %v203 = vpop.xlane.xlu0 %202
      %v204 = vadd.f32 %v180, %v200
      %v205 = vadd.f32 %v181, %v203
      %vm206 = vcmask 7168
      %207 = vst.msk [vmem:[#allocation3] sm:$0xff] %vm206, %v204
      %208 = vst.msk [vmem:[#allocation3 + $0x8] sm:$0xff] %vm206, %v205
      %209 = vst.msk [vmem:[#allocation2] sm:$0xff] %vm206, %v170
      %210 = vst.msk [vmem:[#allocation2 + $0x8] sm:$0xff] %vm206, %v171
    $region25: #{tpu_custom_call.1} parent=1 // pred_fallthru
      _
    %p211 = pneg %p140
    // Predicated region
    $region26: #{tpu_custom_call.1} parent=1 // pred_check
      _
    $region27: #{tpu_custom_call.1} parent=1 // pred_check_branch
      %213 = sbr.rel (%p140) target = $region29
    $region28: #{tpu_custom_call.1} parent=1 // pred_region
      %v214 = vld [vmem:[#allocation2] sm:$0xff]
      %v215 = vld [vmem:[#allocation2 + $0x8] sm:$0xff]
      %vm216 = vcmask 130048
      %v217 = vsel %vm216, %v131, -inf
      %218 = vmax.xlane.f32.xlu0 %v217
      %v219 = vpop.xlane.xlu0 %218
      %v220 = vsel %vm216, %v132, -inf
      %221 = vmax.xlane.f32.xlu0 %v220
      %v222 = vpop.xlane.xlu0 %221
      %v223 = vmax.f32 %v214, %v219
      %v224 = vmax.f32 %v215, %v222
      %v225 = vld [vmem:[#allocation3] sm:$0xff]
      %v226 = vld [vmem:[#allocation3 + $0x8] sm:$0xff]
      %v227 = vsub.f32 %v214, %v223
      %v228 = vsub.f32 %v215, %v224
      %v229 = vmul.f32 %v227, 1.442695
      %v230 = vpow.pop %v229
      %v231 = vmul.f32 %v228, 1.442695
      %v232 = vpow.pop %v231
      %v233 = vmul.f32 %v225, %v230
      %v234 = vmul.f32 %v226, %v232
      %236 = vset.pattern.permute.xlu0 0
      %237 = vperm.xlu0 %236, %v223
      %v238 = vpop.permute.xlu0 %237
      %241 = vset.pattern.permute.xlu0 0
      %242 = vperm.xlu0 %241, %v224
      %v243 = vpop.permute.xlu0 %242
      %v245 = vsub.f32 %v131, %v238
      %v246 = vsub.f32 %v132, %v243
      %v247 = vmul.f32 %v245, 1.442695
      %v248 = vpow.pop %v247
      %v249 = vmul.f32 %v246, 1.442695
      %v250 = vpow.pop %v249
      %v251 = vsel %vm216, %v248, 0.0
      %252 = vadd.xlane.f32.xlu0 %v251
      %v253 = vpop.xlane.xlu0 %252
      %v254 = vsel %vm216, %v250, 0.0
      %255 = vadd.xlane.f32.xlu0 %v254
      %v256 = vpop.xlane.xlu0 %255
      %v257 = vadd.f32 %v233, %v253
      %v258 = vadd.f32 %v234, %v256
      %vm259 = vcmask 7168
      %260 = vst.msk [vmem:[#allocation3] sm:$0xff] %vm259, %v257
      %261 = vst.msk [vmem:[#allocation3 + $0x8] sm:$0xff] %vm259, %v258
      %262 = vst.msk [vmem:[#allocation2] sm:$0xff] %vm259, %v223
      %263 = vst.msk [vmem:[#allocation2 + $0x8] sm:$0xff] %vm259, %v224
    $region29: #{tpu_custom_call.1} parent=1 // pred_fallthru
      _
    %s264 = sadd.s32 %s39, 17
    %p265 = scmp.lt.s32.totalorder %s40, %s264
    %s266 = sadd.s32 %s39, 1
    %p267 = scmp.lt.s32.totalorder %s266, %s133
    %p268 = pnand %p265, %p267
    %p269 = pneg %p268
    // Predicated region
    $region30: #{tpu_custom_call.1} parent=1 // pred_check
      _
    $region31: #{tpu_custom_call.1} parent=1 // pred_check_branch
      %271 = sbr.rel (%p268) target = $region33
    $region32: #{tpu_custom_call.1} parent=1 // pred_region
      %v272 = vlaneseq
      %v273 = vshrl.u32 %v272, 7
      %v274 = vadd.s32 %v273, 8
      %v275 = vstv %s39
      %v276 = vadd.s32 %v275, %v273
      %v277 = vadd.s32 %v275, %v274
      %v278 = vlaneseq
      %v279 = vand.u32 %v278, 127
      %v280 = vstv %s40
      %v281 = vadd.s32 %v280, %v279
      %v282 = vld [vmem:[#allocation4] sm:$0xff]
      %v283 = vld [vmem:[#allocation4 + $0x8] sm:$0xff]
      %v284 = vadd.s32 %v276, 1
      %v285 = vadd.s32 %v277, 1
      %vm286 = vcmp.eq.s32.totalorder %v281, %v284
      %vm287 = vcmp.eq.s32.totalorder %v281, %v285
      %v288 = vsel %vm286, %v131, 0.0
      %v289 = vsel %vm287, %v132, 0.0
      %vm290 = vcmask 130048
      %v291 = vsel %vm290, %v288, 0.0
      %292 = vadd.xlane.f32.xlu0 %v291
      %v293 = vpop.xlane.xlu0 %292
      %v294 = vsel %vm290, %v289, 0.0
      %295 = vadd.xlane.f32.xlu0 %v294
      %v296 = vpop.xlane.xlu0 %295
      %v297 = vadd.f32 %v282, %v293
      %v298 = vadd.f32 %v283, %v296
      %vm299 = vcmask 7168
      %300 = vst.msk [vmem:[#allocation4] sm:$0xff] %vm299, %v297
      %301 = vst.msk [vmem:[#allocation4 + $0x8] sm:$0xff] %vm299, %v298
    $region33: #{tpu_custom_call.1} parent=1 // pred_fallthru
      _
    // Predicated region
    $region34: #{tpu_custom_call.1} parent=1 // pred_check
      %p302 = pneg %p41
    $region35: #{tpu_custom_call.1} parent=1 // pred_check_branch
      %304 = sbr.rel (%p302) target = $region37
    $region36: #{tpu_custom_call.1} parent=1 // pred_region
      %v305 = vld [vmem:[#allocation2] sm:$0xff]
      %v306 = vld [vmem:[#allocation2 + $0x8] sm:$0xff]
      %v307 = vld [vmem:[#allocation3] sm:$0xff]
      %v308 = vld [vmem:[#allocation3 + $0x8] sm:$0xff]
      %v309 = vlog2.pop %v307
      %v310 = vmul.f32 %v309, 0.6931472
      %v311 = vlog2.pop %v308
      %v312 = vmul.f32 %v311, 0.6931472
      %v313 = vadd.f32 %v305, %v310
      %v314 = vadd.f32 %v306, %v312
      %v315 = vld [vmem:[#allocation4] sm:$0xff]
      %v316 = vld [vmem:[#allocation4 + $0x8] sm:$0xff]
      %v317 = vsub.f32 %v313, %v315
      %v318 = vsub.f32 %v314, %v316
      %vm319 = vcmask 7168
      %320 = vst.msk [vmem:[%s2] sm:$0xff] %vm319, %v317
      %321 = vst.msk [vmem:[%s2 + $0x8] sm:$0xff] %vm319, %v318
    $region37: #{tpu_custom_call.1} parent=1 // pred_fallthru
      _
    // Predicated region
    $region38: #{tpu_custom_call.1} parent=1 // pred_check
      _
    $region39: #{tpu_custom_call.1} parent=1 // pred_check_branch
      %323 = sbr.rel (0) target = $region41
    $region40: #{tpu_custom_call.1} parent=1 // pred_region
      _
    $region41: #{tpu_custom_call.1} parent=1 // pred_fallthru
      _
    // Predicated region
    $region42: #{tpu_custom_call.1} parent=1 // pred_check
      _
    $region43: #{tpu_custom_call.1} parent=1 // pred_check_branch
      %325 = sbr.rel (0) target = $region45
    $region44: #{tpu_custom_call.1} parent=1 // pred_region
      _
    $region45: #{tpu_custom_call.1} parent=1 // pred_fallthru
      _
    %326 = vsyncpa [#allocation6], 1
    %327 = vsyncpa [#allocation8], 1

</llo_original>
